<compile_context>
chip_gen: v5e
topology: v5e:2x2
jax: 0.10.0
libtpu: 0.0.40
codegen_flags: <defaults>
</compile_context>

<pallas_src>
import functools

import jax
import jax.numpy as jnp
from jax.experimental import pallas as pl
from jax.experimental.pallas import tpu as pltpu

LANES = 128
SUBLANES = 8


def _round_up(x, m):
    return ((x + m - 1) // m) * m


def _default_num_slices():
    """2 slices only on dual-TensorCore (v7x-class) chips, else 1."""
    try:
        kind = jax.devices()[0].device_kind.lower()
    except Exception:
        return 1
    return 2 if ("v7" in kind or "tpu7" in kind) else 1


def _pinball_kernel(yp_ref, y_ref, out_ref, *, quantile, steps, tm, rows):
    """Streams one (tm, 128) tile, accumulates masked pinball loss into out_ref."""
    c = pl.program_id(0)
    i = pl.program_id(1)

    @pl.when(i == 0)
    def _():
        out_ref[...] = jnp.zeros_like(out_ref)

    residual = y_ref[...].astype(jnp.float32) - yp_ref[...].astype(jnp.float32)
    loss = jnp.maximum(residual * (quantile - 1.0), residual * quantile)

    # Row-granular mask against the true row count.  This zeroes:
    #  - the unspecified (possibly NaN/Inf) tail rows of the ragged last block,
    #  - entire blocks whose logical index was clamped in the index_map.
    # Use the *logical* (unclamped) row offset of this grid step.
    r0 = (c * steps + i) * tm
    row_idx = r0 + jax.lax.broadcasted_iota(jnp.int32, (tm, LANES), 0)
    loss = jnp.where(row_idx < rows, loss, 0.0)

    # VPU-only partial accumulation into a vreg-shaped (8, 128) block; the
    # single cross-lane reduce is deferred to the wrapper.
    out_ref[...] += loss.reshape(tm // SUBLANES, SUBLANES, LANES).sum(axis=0)


def pinball_loss(y_pred, y, quantile, *, tile_rows=4096, num_slices=None):
    """Pinball (quantile) loss, mean-reduced over all elements.

    Passing bf16 y_pred / y halves HBM traffic; accumulation is always f32.
    """
    assert y_pred.shape == y.shape, "y_pred and y must have the same shape"
    n = y_pred.size
    if num_slices is None:
        num_slices = _default_num_slices()

    yp = y_pred.reshape(-1)
    yt = y.reshape(-1)

    rows = pl.cdiv(n, LANES)
    padded_n = rows * LANES
    if padded_n != n:
        # Only when n is not lane-aligned: pad < 128 zeros so the (rows, 128)
        # reshape is legal.  Zero residual -> zero loss; mean divides by true n.
        yp = jnp.pad(yp, (0, padded_n - n))
        yt = jnp.pad(yt, (0, padded_n - n))
    yp2 = yp.reshape(rows, LANES)
    yt2 = yt.reshape(rows, LANES)

    # Row tile: multiple of 8 (satisfies the (8,128) block constraint), capped
    # at tile_rows and at the (rounded-up) row count.
    tm = max(SUBLANES,
             min(_round_up(tile_rows, SUBLANES), _round_up(rows, SUBLANES)))
    total_blocks = pl.cdiv(rows, tm)
    num_slices = max(1, min(num_slices, total_blocks))
    steps = pl.cdiv(total_blocks, num_slices)
    last_block = total_blocks - 1

    # Clamp logical block indices into range; clamped (duplicate) blocks are
    # fully zeroed by the in-kernel row mask.
    def in_map(c, i):
        return (jnp.minimum(c * steps + i, last_block), 0)

    kernel = functools.partial(
        _pinball_kernel, quantile=float(quantile), steps=steps, tm=tm, rows=rows)

    # Raise the scoped-VMEM limit only if the requested tile needs it
    # (e.g. tile_rows=8192 f32 on v5e's 16 MiB default).
    in_bytes_per_row = LANES * (yp2.dtype.itemsize + yt2.dtype.itemsize)
    vmem_need = 2 * tm * in_bytes_per_row + (1 << 20)  # double-buffered inputs
    cp_kwargs = dict(dimension_semantics=("parallel", "arbitrary"))
    if vmem_need > (16 << 20):
        cp_kwargs["vmem_limit_bytes"] = int(min(vmem_need + (8 << 20), 64 << 20))

    partials = pl.pallas_call(
        kernel,
        out_shape=jax.ShapeDtypeStruct((num_slices, SUBLANES, LANES), jnp.float32),
        grid_spec=pltpu.PrefetchScalarGridSpec(
            num_scalar_prefetch=0,
            grid=(num_slices, steps),
            in_specs=[
                pl.BlockSpec((tm, LANES), in_map),
                pl.BlockSpec((tm, LANES), in_map),
            ],
            out_specs=pl.BlockSpec((None, SUBLANES, LANES), lambda c, i: (c, 0, 0)),
        ),
        compiler_params=pltpu.CompilerParams(**cp_kwargs),
    )(yp2, yt2)

    # Single cross-lane/sublane reduce + mean normalization (true element count).
    return jnp.sum(partials) / jnp.float32(n)


def pinball_loss_ref(y_pred, y, quantile):
    residual = y.astype(jnp.float32) - y_pred.astype(jnp.float32)
    loss = jnp.maximum(residual * (quantile - 1.0), residual * quantile)
    return jnp.mean(loss)


if __name__ == "__main__":
    key = jax.random.PRNGKey(0)
    k1, k2, k3, k4, k5, k6 = jax.random.split(key, 6)
    quantile = 0.7  # deterministic "parameter" from __init__

    # NCHW input, element count a multiple of 128 (no-padding fast path).
    shape = (2, 4, 16, 16)
    y_pred = jax.random.normal(k1, shape, dtype=jnp.float32)
    y = jax.random.normal(k2, shape, dtype=jnp.float32)
    out = jax.block_until_ready(pinball_loss(y_pred, y, quantile))
    ref = pinball_loss_ref(y_pred, y, quantile)
    assert jnp.allclose(out, ref, atol=1e-6, rtol=1e-5), (out, ref)

    # Element count not a multiple of 128 (exercises the <128-element pad
    # plus in-kernel masking of the ragged block).
    shape2 = (3, 5, 7, 11)
    y_pred2 = jax.random.normal(k3, shape2, dtype=jnp.float32)
    y2 = jax.random.normal(k4, shape2, dtype=jnp.float32)
    out2 = jax.block_until_ready(pinball_loss(y_pred2, y2, quantile))
    ref2 = pinball_loss_ref(y_pred2, y2, quantile)
    assert jnp.allclose(out2, ref2, atol=1e-6, rtol=1e-5), (out2, ref2)

    # Force multiple grid steps + 2 slices + a clamped/duplicated tail block
    # (exercises index_map clamping and the row mask on every path).
    shape3 = (4, 3, 100, 7)  # 8400 elements -> 66 rows of 128
    y_pred3 = jax.random.normal(k5, shape3, dtype=jnp.float32)
    y3 = jax.random.normal(k6, shape3, dtype=jnp.float32)
    out3 = jax.block_until_ready(
        pinball_loss(y_pred3, y3, quantile, tile_rows=8, num_slices=2))
    ref3 = pinball_loss_ref(y_pred3, y3, quantile)
    assert jnp.allclose(out3, ref3, atol=1e-6, rtol=1e-5), (out3, ref3)

    print("KERNEL_OK")
</pallas_src>

<mosaic_0001>
module attributes {stable_mosaic.version = 11 : i64} {
  func.func @_pinball_kernel(%arg0: i32, %arg1: i32, %arg2: memref<16x128xf32, #tpu.memory_space<vmem>>, %arg3: memref<16x128xf32, #tpu.memory_space<vmem>>, %arg4: memref<1x8x128xf32, #tpu.memory_space<vmem>>) attributes {dimension_semantics = [#tpu.dimension_semantics<parallel>, #tpu.dimension_semantics<arbitrary>], iteration_bounds = array<i64: 1, 1>, scalar_prefetch = 0 : i64, scratch_operands = 0 : i64, tpu.core_type = #tpu.core_type<tc>, window_params = [{transform_indices = @transform_0, window_bounds = array<i64: 16, 128>}, {transform_indices = @transform_1, window_bounds = array<i64: 16, 128>}, {transform_indices = @transform_2, window_bounds = array<i64: 1, 8, 128>}]} {
    %c0_i32 = arith.constant 0 : i32
    %0 = arith.cmpi eq, %arg1, %c0_i32 : i32
    %1 = arith.extui %0 : i1 to i32
    %c0_i32_0 = arith.constant 0 : i32
    %2 = arith.cmpi ne, %1, %c0_i32_0 : i32
    scf.if %2 {
      %cst_14 = arith.constant 0.000000e+00 : f32
      %29 = vector.broadcast %cst_14 : f32 to vector<8x128xf32>
      %c0_15 = arith.constant 0 : index
      %c0_16 = arith.constant 0 : index
      %c0_17 = arith.constant 0 : index
      %30 = vector.load %arg4[%c0_15, %c0_16, %c0_17] : memref<1x8x128xf32, #tpu.memory_space<vmem>>, vector<1x8x128xf32>
      %31 = vector.shape_cast %30 : vector<1x8x128xf32> to vector<8x128xf32>
      %32 = vector.shape_cast %29 : vector<8x128xf32> to vector<1x8x128xf32>
      tpu.vector_store %arg4[%c0_15, %c0_16, %c0_17], %32 {strides = array<i32>} : memref<1x8x128xf32, #tpu.memory_space<vmem>>, vector<1x8x128xf32>,
    } else {
    }
    %c0 = arith.constant 0 : index
    %c0_1 = arith.constant 0 : index
    %3 = vector.load %arg3[%c0, %c0_1] : memref<16x128xf32, #tpu.memory_space<vmem>>, vector<16x128xf32>
    %c0_2 = arith.constant 0 : index
    %c0_3 = arith.constant 0 : index
    %4 = vector.load %arg2[%c0_2, %c0_3] : memref<16x128xf32, #tpu.memory_space<vmem>>, vector<16x128xf32>
    %5 = arith.subf %3, %4 : vector<16x128xf32>
    %cst = arith.constant -3.000000e-01 : f32
    %6 = vector.broadcast %cst : f32 to vector<16x128xf32>
    %7 = arith.mulf %5, %6 : vector<16x128xf32>
    %cst_4 = arith.constant 0.699999988 : f32
    %8 = vector.broadcast %cst_4 : f32 to vector<16x128xf32>
    %9 = arith.mulf %5, %8 : vector<16x128xf32>
    %10 = arith.maximumf %7, %9 : vector<16x128xf32>
    %c1_i32 = arith.constant 1 : i32
    %11 = arith.muli %arg0, %c1_i32 : i32
    %12 = arith.addi %11, %arg1 : i32
    %c16_i32 = arith.constant 16 : i32
    %13 = arith.muli %12, %c16_i32 : i32
    %14 = tpu.iota {dimensions = array<i32: 0>} : vector<16x128xi32>
    %15 = vector.broadcast %13 : i32 to vector<16x128xi32>
    %16 = arith.addi %15, %14 : vector<16x128xi32>
    %c16_i32_5 = arith.constant 16 : i32
    %17 = vector.broadcast %c16_i32_5 : i32 to vector<16x128xi32>
    %18 = arith.cmpi slt, %16, %17 : vector<16x128xi32>
    %cst_6 = arith.constant 0.000000e+00 : f32
    %19 = vector.broadcast %cst_6 : f32 to vector<16x128xf32>
    %20 = arith.select %18, %10, %19 : vector<16x128xi1>, vector<16x128xf32>
    %c0_7 = arith.constant 0 : index
    %c0_8 = arith.constant 0 : index
    %c0_9 = arith.constant 0 : index
    %21 = vector.load %arg4[%c0_7, %c0_8, %c0_9] : memref<1x8x128xf32, #tpu.memory_space<vmem>>, vector<1x8x128xf32>
    %22 = vector.shape_cast %21 : vector<1x8x128xf32> to vector<8x128xf32>
    %23 = vector.shape_cast %20 : vector<16x128xf32> to vector<2x8x128xf32>
    %cst_10 = arith.constant dense<0.000000e+00> : vector<8x128xf32>
    %24 = vector.multi_reduction <add>, %23, %cst_10 [0] : vector<2x8x128xf32> to vector<8x128xf32>
    %25 = arith.addf %22, %24 : vector<8x128xf32>
    %c0_11 = arith.constant 0 : index
    %c0_12 = arith.constant 0 : index
    %c0_13 = arith.constant 0 : index
    %26 = vector.load %arg4[%c0_11, %c0_12, %c0_13] : memref<1x8x128xf32, #tpu.memory_space<vmem>>, vector<1x8x128xf32>
    %27 = vector.shape_cast %26 : vector<1x8x128xf32> to vector<8x128xf32>
    %28 = vector.shape_cast %25 : vector<8x128xf32> to vector<1x8x128xf32>
    tpu.vector_store %arg4[%c0_11, %c0_12, %c0_13], %28 {strides = array<i32>} : memref<1x8x128xf32, #tpu.memory_space<vmem>>, vector<1x8x128xf32>,
    return
  }
  func.func @transform_0(%arg0: i32, %arg1: i32) -> (i32, i32) {
    %c1_i32 = arith.constant 1 : i32
    %0 = arith.muli %arg0, %c1_i32 : i32
    %1 = arith.addi %0, %arg1 : i32
    %c0_i32 = arith.constant 0 : i32
    %2 = arith.minsi %1, %c0_i32 : i32
    %c0_i32_0 = arith.constant 0 : i32
    %c0_i32_1 = arith.constant 0 : i32
    return %2, %c0_i32_0 : i32, i32
  }
  func.func @transform_1(%arg0: i32, %arg1: i32) -> (i32, i32) {
    %c1_i32 = arith.constant 1 : i32
    %0 = arith.muli %arg0, %c1_i32 : i32
    %1 = arith.addi %0, %arg1 : i32
    %c0_i32 = arith.constant 0 : i32
    %2 = arith.minsi %1, %c0_i32 : i32
    %c0_i32_0 = arith.constant 0 : i32
    %c0_i32_1 = arith.constant 0 : i32
    return %2, %c0_i32_0 : i32, i32
  }
  func.func @transform_2(%arg0: i32, %arg1: i32) -> (i32, i32, i32) {
    %c0_i32 = arith.constant 0 : i32
    %c0_i32_0 = arith.constant 0 : i32
    %c0_i32_1 = arith.constant 0 : i32
    return %arg0, %c0_i32, %c0_i32_0 : i32, i32, i32
  }
}

</mosaic_0001>

<llo_original>
// kernel: tpu_custom_call.1
$region0: #{tpu_custom_call.1}
  #allocation0 [shape = 'u32[]', space=smem, size = 0x4, offset = 0x4, fixed_abs, tag = 'smem constant byte address 0x4 - core index']
  #allocation1 [shape = 'u32[72,128]{1,0:T(1,128)}', space=vmem, size = 0x9000, scoped, tag = 'internal scratch']
  %s0 = inlined_call_operand.hbm [shape: f32[16,128], index: 0, kind: input, shape index: {}]
  %s1 = inlined_call_operand.hbm [shape: f32[16,128], index: 1, kind: input, shape index: {}]
  %s2 = inlined_call_operand.hbm [shape: f32[1,8,128], index: 2, kind: output, shape index: {}]
  %s3 = sld [smem:[#allocation0]]
  $region30: #{tpu_custom_call.1} parent=0
    _
  %s5 = ssub.s32 1, %s3
  %s6 = scalar_select 0, %s5, %s3
  $region1: #{tpu_custom_call.1} parent=0
    #allocation2 [shape = 'u8[8192]{0}', space=vmem, size = 0x2000, scoped, tag = 'input window, operand 0, single buffered']
    #allocation3 [shape = 's32[1]{0}', space=sflag, size = 0x4, scoped, tag = 'scoped memory for tpu_custom_call.1']
    #allocation4 [shape = 's32[1]{0}', space=sflag, size = 0x4, scoped, tag = 'scoped memory for tpu_custom_call.1']
    #allocation5 [shape = 'u8[8192]{0}', space=vmem, size = 0x2000, scoped, tag = 'input window, operand 1, single buffered']
    #allocation6 [shape = 's32[1]{0}', space=sflag, size = 0x4, scoped, tag = 'scoped memory for tpu_custom_call.1']
    #allocation7 [shape = 'u8[4096]{0}', space=vmem, size = 0x1000, scoped, tag = 'output window, operand 0, single buffered']
    %7 = vsyncpa [#allocation3], 0
    %8 = vsyncpa [#allocation6], 0
    %9 = vsyncpa [#allocation4], 0
    // Predicated region
    $region2: #{tpu_custom_call.1} parent=1 // pred_check
      _
    $region3: #{tpu_custom_call.1} parent=1 // pred_check_branch
      %11 = sbr.rel (0) target = $region5
    $region4: #{tpu_custom_call.1} parent=1 // pred_region
      %s12 = sadd.s32 0, 0
      %p13 = scmp.lt.s32.totalorder %s12, 0
      %s14 = scalar_select %p13, %s12, 0
      %s15 = smul.u32 2, %s14
      %17 = vsyncadd [#allocation3], 0
      %s18 = smul.addr %s15, 8
      %s19 = scalar_lea.hbm %s0, %s18
      %s20 = sshll.u32 %s19, 4
      %s21 = int_to_ptr.hbm [resolvable:$true] %s20
      %s22 = sshll.u32 [#allocation2], 4
      %s23 = int_to_ptr.vmem [resolvable:$true] %s22
      %28 = dma.hbm_to_vmem [thread:$0]  %s21, 256, %s23, [#allocation3], 128, 128, 8
    $region5: #{tpu_custom_call.1} parent=1 // pred_fallthru
      _
    // Predicated region
    $region6: #{tpu_custom_call.1} parent=1 // pred_check
      _
    $region7: #{tpu_custom_call.1} parent=1 // pred_check_branch
      %30 = sbr.rel (0) target = $region9
    $region8: #{tpu_custom_call.1} parent=1 // pred_region
      %s31 = sadd.s32 0, 0
      %p32 = scmp.lt.s32.totalorder %s31, 0
      %s33 = scalar_select %p32, %s31, 0
      %s34 = smul.u32 2, %s33
      %36 = vsyncadd [#allocation6], 0
      %s37 = smul.addr %s34, 8
      %s38 = scalar_lea.hbm %s1, %s37
      %s39 = sshll.u32 %s38, 4
      %s40 = int_to_ptr.hbm [resolvable:$true] %s39
      %s41 = sshll.u32 [#allocation5], 4
      %s42 = int_to_ptr.vmem [resolvable:$true] %s41
      %47 = dma.hbm_to_vmem [thread:$0]  %s40, 256, %s42, [#allocation6], 128, 128, 8
    $region9: #{tpu_custom_call.1} parent=1 // pred_fallthru
      _
    // Predicated region
    $region10: #{tpu_custom_call.1} parent=1 // pred_check
      _
    $region11: #{tpu_custom_call.1} parent=1 // pred_check_branch
      %49 = sbr.rel (0) target = $region13
    $region12: #{tpu_custom_call.1} parent=1 // pred_region
      %51 = dma.done [#allocation3], 256
    $region13: #{tpu_custom_call.1} parent=1 // pred_fallthru
      _
    // Predicated region
    $region14: #{tpu_custom_call.1} parent=1 // pred_check
      _
    $region15: #{tpu_custom_call.1} parent=1 // pred_check_branch
      %53 = sbr.rel (0) target = $region17
    $region16: #{tpu_custom_call.1} parent=1 // pred_region
      %55 = dma.done [#allocation6], 256
    $region17: #{tpu_custom_call.1} parent=1 // pred_fallthru
      _
    %s56 = sadd.s32 0, 0
    %p57 = scmp.lt.s32.totalorder %s56, 0
    %s58 = scalar_select %p57, %s56, 0
    %s59 = smul.u32 2, %s58
    %s60 = sadd.s32 0, 0
    %p61 = scmp.lt.s32.totalorder %s60, 0
    %s62 = scalar_select %p61, %s60, 0
    %s63 = smul.u32 2, %s62
    %p64 = scmp.eq.s32.totalorder 0, 0
    // Predicated region
    $region18: #{tpu_custom_call.1} parent=1 // pred_check
      %p65 = pneg %p64
    $region19: #{tpu_custom_call.1} parent=1 // pred_check_branch
      %67 = sbr.rel (%p65) target = $region21
    $region20: #{tpu_custom_call.1} parent=1 // pred_region
      %68 = vst [vmem:[#allocation7] sm:$0xff] 0.0
    $region21: #{tpu_custom_call.1} parent=1 // pred_fallthru
      _
    %v69 = vld [vmem:[#allocation5] sm:$0xff]
    %v70 = vld [vmem:[#allocation5 + $0x8] sm:$0xff]
    %v71 = vld [vmem:[#allocation2] sm:$0xff]
    %v72 = vld [vmem:[#allocation2 + $0x8] sm:$0xff]
    %v73 = vsub.f32 %v69, %v71
    %v74 = vsub.f32 %v70, %v72
    %v75 = vmul.f32 %v73, -0.3
    %v76 = vmul.f32 %v74, -0.3
    %v77 = vmul.f32 %v73, 0.7
    %v78 = vmul.f32 %v74, 0.7
    %v79 = vmax.f32 %v75, %v77
    %v80 = vmax.f32 %v76, %v78
    %s81 = sadd.s32 0, 0
    %s82 = smul.u32 %s81, 16
    %v83 = vlaneseq
    %v84 = vshrl.u32 %v83, 7
    %v85 = vadd.s32 %v84, 8
    %v86 = vstv %s82
    %v87 = vadd.s32 %v86, %v84
    %v88 = vadd.s32 %v86, %v85
    %vm89 = vcmp.lt.s32.totalorder %v87, 16
    %vm90 = vcmp.lt.s32.totalorder %v88, 16
    %v91 = vsel %vm89, %v79, 0.0
    %v92 = vsel %vm90, %v80, 0.0
    %v93 = vld [vmem:[#allocation7] sm:$0xff]
    %v94 = vadd.f32 %v91, %v92
    %v95 = vadd.f32 %v93, %v94
    %96 = vst [vmem:[#allocation7] sm:$0xff] %v95
    // Predicated region
    $region22: #{tpu_custom_call.1} parent=1 // pred_check
      _
    $region23: #{tpu_custom_call.1} parent=1 // pred_check_branch
      %98 = sbr.rel (0) target = $region25
    $region24: #{tpu_custom_call.1} parent=1 // pred_region
      %100 = vsyncadd [#allocation4], 0
      %s102 = sshll.u32 [#allocation7], 4
      %s103 = int_to_ptr.vmem [resolvable:$true] %s102
      %s104 = sshll.u32 %s2, 4
      %s105 = int_to_ptr.hbm [resolvable:$true] %s104
      %107 = dma.vmem_to_hbm [thread:$0]  %s103, 128, %s105, [#allocation4]
    $region25: #{tpu_custom_call.1} parent=1 // pred_fallthru
      _
    // Predicated region
    $region26: #{tpu_custom_call.1} parent=1 // pred_check
      _
    $region27: #{tpu_custom_call.1} parent=1 // pred_check_branch
      %109 = sbr.rel (0) target = $region29
    $region28: #{tpu_custom_call.1} parent=1 // pred_region
      %111 = dma.done [#allocation4], 128
    $region29: #{tpu_custom_call.1} parent=1 // pred_fallthru
      _
    %112 = vsyncpa [#allocation3], 1
    %113 = vsyncpa [#allocation6], 1
    %114 = vsyncpa [#allocation4], 1

</llo_original>
